<compile_context>
chip_gen: v7x
topology: tpu7x:2x2x1
jax: 0.10.0
libtpu: 0.0.40
codegen_flags: <defaults>
</compile_context>

<pallas_src>
import functools

import numpy as np
import jax
import jax.numpy as jnp
from jax.experimental import pallas as pl
from jax.experimental.pallas import tpu as pltpu

_LOG_2PI = float(np.log(2.0 * np.pi))


def _cdiv(a, b):
    return -(-a // b)


def _round_up(a, b):
    return _cdiv(a, b) * b


def _nlp_kernel(loc_ref, scale_ref, z_ref, out_ref, *, loc_scalar, scale_scalar):
    z = z_ref[...].astype(jnp.float32)

    if loc_scalar:
        # (1,) f32 scalar in SMEM, splat inside the kernel (no HBM broadcast).
        loc = jnp.full(z.shape, loc_ref[0], dtype=jnp.float32)
    else:
        loc = loc_ref[...].astype(jnp.float32)

    if scale_scalar:
        scale = jnp.full(z.shape, scale_ref[0], dtype=jnp.float32)
    else:
        scale = scale_ref[...].astype(jnp.float32)

    # -0.5*log(2*pi*scale^2) - (z-loc)^2/(2*scale^2)
    #   == -0.5*log(2*pi) - log(scale) - 0.5*((z-loc)/scale)^2
    inv_scale = pl.reciprocal(scale, approx=False)   # exact: keeps 1e-5 accuracy
    t = (z - loc) * inv_scale
    out = (-0.5 * _LOG_2PI) - jnp.log(scale) - 0.5 * (t * t)
    out_ref[...] = out.astype(out_ref.dtype)


def normal_log_prob(loc, scale, z, *, lane=1024, row_block=256):
    """Elementwise Normal log-density, computed in a Pallas TPU kernel."""
    loc = jnp.asarray(loc)
    scale = jnp.asarray(scale)
    z = jnp.asarray(z)

    out_shape = jnp.broadcast_shapes(loc.shape, scale.shape, z.shape)
    out_dtype = jnp.result_type(loc.dtype, scale.dtype, z.dtype)
    n = int(np.prod(out_shape)) if len(out_shape) else 1
    if n == 0:
        return jnp.zeros(out_shape, out_dtype)

    # z defines the dense element space (it is almost always already full-size).
    if tuple(z.shape) != tuple(out_shape):
        z = jnp.broadcast_to(z, out_shape)

    loc_scalar = int(loc.size) == 1
    scale_scalar = int(scale.size) == 1
    # TODO(synk): per-feature [D] loc/scale could use a constant-index (1, D)
    # VMEM tile instead of materializing the broadcast; only the scalar case is
    # kept un-materialized here.
    if not loc_scalar and tuple(loc.shape) != tuple(out_shape):
        loc = jnp.broadcast_to(loc, out_shape)
    if not scale_scalar and tuple(scale.shape) != tuple(out_shape):
        scale = jnp.broadcast_to(scale, out_shape)

    # ---- lane-dense 2D tiling of the flattened element space ---------------
    lane = int(lane)
    if n < lane:
        lane = _round_up(n, 128)          # keep the last dim a multiple of 128
    rows = _cdiv(n, lane)
    if rows <= row_block:
        rb = rows                          # single row-block == full dim
        rows_padded = rows
    else:
        rb = row_block                     # fixed (256, 1024) f32 ~ 1 MiB tile
        rows_padded = _round_up(rows, row_block)
    n_padded = rows_padded * lane
    grid = (rows_padded // rb,)

    def _prep(x, fill):
        x = x.reshape((-1,)).astype(out_dtype)
        if n_padded > n:
            x = jnp.pad(x, (0, n_padded - n), constant_values=fill)
        return x.reshape((rows_padded, lane))

    tile_spec = pl.BlockSpec((rb, lane), lambda i: (i, 0))
    smem_spec = pl.BlockSpec(memory_space=pltpu.MemorySpace.SMEM)

    in_specs = []
    args = []
    if loc_scalar:
        in_specs.append(smem_spec)
        args.append(loc.reshape((1,)).astype(jnp.float32))
    else:
        in_specs.append(tile_spec)
        args.append(_prep(loc, 0))
    if scale_scalar:
        in_specs.append(smem_spec)
        args.append(scale.reshape((1,)).astype(jnp.float32))
    else:
        in_specs.append(tile_spec)
        args.append(_prep(scale, 1))       # pad with 1 -> log/recip stay finite
    z2 = _prep(z, 0)
    in_specs.append(tile_spec)
    args.append(z2)

    out_itemsize = jnp.dtype(out_dtype).itemsize
    bytes_accessed = int(
        sum(int(a.size) * a.dtype.itemsize for a in args)
        + n_padded * out_itemsize
    )

    kernel = functools.partial(
        _nlp_kernel, loc_scalar=loc_scalar, scale_scalar=scale_scalar
    )

    out2 = pl.pallas_call(
        kernel,
        out_shape=jax.ShapeDtypeStruct((rows_padded, lane), out_dtype),
        grid_spec=pltpu.PrefetchScalarGridSpec(
            num_scalar_prefetch=0,
            grid=grid,
            in_specs=in_specs,
            out_specs=tile_spec,
        ),
        compiler_params=pltpu.CompilerParams(
            dimension_semantics=("parallel",),
        ),
        cost_estimate=pl.CostEstimate(
            flops=5 * n,
            transcendentals=2 * n,
            bytes_accessed=bytes_accessed,
        ),
    )(*args)

    return out2.reshape((-1,))[:n].reshape(out_shape)


def _reference(loc, scale, z):
    var = scale ** 2
    return -0.5 * jnp.log(2 * np.pi * var) - (z - loc) ** 2 / (2 * var)


if __name__ == "__main__":
    key = jax.random.PRNGKey(0)
    k1, k2, k3 = jax.random.split(key, 3)

    B, S, D = 2, 8, 32  # batch=2, seq=8, hidden=32
    loc = jax.random.normal(k1, (B, S, D), dtype=jnp.float32)
    # keep scale strictly positive
    scale = jax.nn.softplus(jax.random.normal(k2, (B, S, D), dtype=jnp.float32)) + 0.1
    z = jax.random.normal(k3, (B, S, D), dtype=jnp.float32)

    # Full-tensor path.
    out = jax.block_until_ready(normal_log_prob(loc, scale, z))
    ref = _reference(loc, scale, z)
    np.testing.assert_allclose(np.asarray(out), np.asarray(ref), rtol=1e-5, atol=1e-5)

    # Broadcast path: scalar loc/scale stay un-materialized (SMEM scalars).
    loc_s = jnp.float32(0.3)
    scale_s = jnp.float32(1.7)
    out_s = jax.block_until_ready(normal_log_prob(loc_s, scale_s, z))
    ref_s = _reference(loc_s, scale_s, z)
    np.testing.assert_allclose(np.asarray(out_s), np.asarray(ref_s), rtol=1e-5, atol=1e-5)

    print("KERNEL_OK")
</pallas_src>

<mosaic_0001>
module attributes {stable_mosaic.version = 11 : i64} {
  func.func @_nlp_kernel(%arg0: i32, %arg1: memref<1x512xf32, #tpu.memory_space<vmem>>, %arg2: memref<1x512xf32, #tpu.memory_space<vmem>>, %arg3: memref<1x512xf32, #tpu.memory_space<vmem>>, %arg4: memref<1x512xf32, #tpu.memory_space<vmem>>) attributes {dimension_semantics = [#tpu.dimension_semantics<parallel>], iteration_bounds = array<i64: 1>, scalar_prefetch = 0 : i64, scratch_operands = 0 : i64, tpu.core_type = #tpu.core_type<tc>, window_params = [{transform_indices = @transform_0, window_bounds = array<i64: 1, 512>}, {transform_indices = @transform_1, window_bounds = array<i64: 1, 512>}, {transform_indices = @transform_2, window_bounds = array<i64: 1, 512>}, {transform_indices = @transform_3, window_bounds = array<i64: 1, 512>}]} {
    %c0 = arith.constant 0 : index
    %c0_0 = arith.constant 0 : index
    %0 = vector.load %arg3[%c0, %c0_0] : memref<1x512xf32, #tpu.memory_space<vmem>>, vector<1x512xf32>
    %c0_1 = arith.constant 0 : index
    %c0_2 = arith.constant 0 : index
    %1 = vector.load %arg1[%c0_1, %c0_2] : memref<1x512xf32, #tpu.memory_space<vmem>>, vector<1x512xf32>
    %c0_3 = arith.constant 0 : index
    %c0_4 = arith.constant 0 : index
    %2 = vector.load %arg2[%c0_3, %c0_4] : memref<1x512xf32, #tpu.memory_space<vmem>>, vector<1x512xf32>
    %3 = tpu.reciprocal %2 : vector<1x512xf32> -> vector<1x512xf32>
    %4 = arith.subf %0, %1 : vector<1x512xf32>
    %5 = arith.mulf %4, %3 : vector<1x512xf32>
    %6 = math.log %2 : vector<1x512xf32>
    %cst = arith.constant -0.918938517 : f32
    %7 = vector.broadcast %cst : f32 to vector<1x512xf32>
    %8 = arith.subf %7, %6 : vector<1x512xf32>
    %9 = arith.mulf %5, %5 : vector<1x512xf32>
    %cst_5 = arith.constant 5.000000e-01 : f32
    %10 = vector.broadcast %cst_5 : f32 to vector<1x512xf32>
    %11 = arith.mulf %10, %9 : vector<1x512xf32>
    %12 = arith.subf %8, %11 : vector<1x512xf32>
    %c0_6 = arith.constant 0 : index
    %c0_7 = arith.constant 0 : index
    %13 = vector.load %arg4[%c0_6, %c0_7] : memref<1x512xf32, #tpu.memory_space<vmem>>, vector<1x512xf32>
    tpu.vector_store %arg4[%c0_6, %c0_7], %12 {strides = array<i32>} : memref<1x512xf32, #tpu.memory_space<vmem>>, vector<1x512xf32>,
    return
  }
  func.func @transform_0(%arg0: i32) -> (i32, i32) {
    %c0_i32 = arith.constant 0 : i32
    %c0_i32_0 = arith.constant 0 : i32
    return %arg0, %c0_i32 : i32, i32
  }
  func.func @transform_1(%arg0: i32) -> (i32, i32) {
    %c0_i32 = arith.constant 0 : i32
    %c0_i32_0 = arith.constant 0 : i32
    return %arg0, %c0_i32 : i32, i32
  }
  func.func @transform_2(%arg0: i32) -> (i32, i32) {
    %c0_i32 = arith.constant 0 : i32
    %c0_i32_0 = arith.constant 0 : i32
    return %arg0, %c0_i32 : i32, i32
  }
  func.func @transform_3(%arg0: i32) -> (i32, i32) {
    %c0_i32 = arith.constant 0 : i32
    %c0_i32_0 = arith.constant 0 : i32
    return %arg0, %c0_i32 : i32, i32
  }
}

</mosaic_0001>

<llo_original>
// kernel: tpu_custom_call.1
$region0: #{tpu_custom_call.1}
  #allocation0 [shape = 'u32[]', space=smem, size = 0x4, offset = 0x4, fixed_abs, tag = 'smem constant byte address 0x4 - core index']
  #allocation1 [shape = 'u32[144,128]{1,0:T(1,128)}', space=vmem, size = 0x12000, scoped, tag = 'internal scratch']
  %s0 = inlined_call_operand.hbm [shape: f32[1,512], index: 0, kind: input, shape index: {}]
  %s1 = inlined_call_operand.hbm [shape: f32[1,512], index: 1, kind: input, shape index: {}]
  %s2 = inlined_call_operand.vmem [shape: f32[1,512], index: 2, kind: input, shape index: {}]
  %s3 = inlined_call_operand.hbm [shape: f32[1,512], index: 3, kind: output, shape index: {}]
  %s4 = sld [smem:[#allocation0]]
  $region30: #{tpu_custom_call.1} parent=0
    _
  %s6 = ssub.s32 1, %s4
  %s7 = scalar_select 0, %s6, %s4
  $region1: #{tpu_custom_call.1} parent=0
    #allocation2 [shape = 'u8[2048]{0}', space=vmem, size = 0x800, scoped, tag = 'input window, operand 0, single buffered']
    #allocation3 [shape = 's32[1]{0}', space=sflag, size = 0x4, scoped, tag = 'scoped memory for tpu_custom_call.1']
    #allocation4 [shape = 's32[1]{0}', space=sflag, size = 0x4, scoped, tag = 'scoped memory for tpu_custom_call.1']
    #allocation5 [shape = 'u8[2048]{0}', space=vmem, size = 0x800, scoped, tag = 'input window, operand 1, single buffered']
    #allocation6 [shape = 's32[1]{0}', space=sflag, size = 0x4, scoped, tag = 'scoped memory for tpu_custom_call.1']
    #allocation7 [shape = 'u8[2048]{0}', space=vmem, size = 0x800, scoped, tag = 'output window, operand 0, single buffered']
    %8 = vsyncpa [#allocation3], 0
    %9 = vsyncpa [#allocation6], 0
    %10 = vsyncpa [#allocation4], 0
    // Predicated region
    $region2: #{tpu_custom_call.1} parent=1 // pred_check
      _
    $region3: #{tpu_custom_call.1} parent=1 // pred_check_branch
      %12 = sbr.rel (0) target = $region5
    $region4: #{tpu_custom_call.1} parent=1 // pred_region
      %s14 = ssub.s32 64, 64
      %15 = vsyncadd [#allocation3], %s14
      %s17 = sshll.u32 [#allocation2], 4
      %s18 = int_to_ptr.vmem [resolvable:$true] %s17
      %20 = dma.hbm_to_vmem [thread:$0]  %s0, 64, %s18, [#allocation3]
    $region5: #{tpu_custom_call.1} parent=1 // pred_fallthru
      _
    // Predicated region
    $region6: #{tpu_custom_call.1} parent=1 // pred_check
      _
    $region7: #{tpu_custom_call.1} parent=1 // pred_check_branch
      %22 = sbr.rel (0) target = $region9
    $region8: #{tpu_custom_call.1} parent=1 // pred_region
      %s24 = ssub.s32 64, 64
      %25 = vsyncadd [#allocation6], %s24
      %s27 = sshll.u32 [#allocation5], 4
      %s28 = int_to_ptr.vmem [resolvable:$true] %s27
      %30 = dma.hbm_to_vmem [thread:$0]  %s1, 64, %s28, [#allocation6]
    $region9: #{tpu_custom_call.1} parent=1 // pred_fallthru
      _
    // Predicated region
    $region10: #{tpu_custom_call.1} parent=1 // pred_check
      _
    $region11: #{tpu_custom_call.1} parent=1 // pred_check_branch
      %32 = sbr.rel (0) target = $region13
    $region12: #{tpu_custom_call.1} parent=1 // pred_region
      _
    $region13: #{tpu_custom_call.1} parent=1 // pred_fallthru
      _
    // Predicated region
    $region14: #{tpu_custom_call.1} parent=1 // pred_check
      _
    $region15: #{tpu_custom_call.1} parent=1 // pred_check_branch
      %34 = sbr.rel (0) target = $region17
    $region16: #{tpu_custom_call.1} parent=1 // pred_region
      %35 = dma.done [#allocation3], 64
    $region17: #{tpu_custom_call.1} parent=1 // pred_fallthru
      _
    // Predicated region
    $region18: #{tpu_custom_call.1} parent=1 // pred_check
      _
    $region19: #{tpu_custom_call.1} parent=1 // pred_check_branch
      %37 = sbr.rel (0) target = $region21
    $region20: #{tpu_custom_call.1} parent=1 // pred_region
      %38 = dma.done [#allocation6], 64
    $region21: #{tpu_custom_call.1} parent=1 // pred_fallthru
      _
    %v39 = vld [vmem:[%s2] sm:$0xf]
    %v40 = vld [vmem:[#allocation2] sm:$0xf]
    %v41 = vld [vmem:[#allocation5] sm:$0xf]
    %v42 = vrcp.pop %v41
    %v43 = vsub.f32 %v39, %v40
    %v44 = vmul.f32 %v43, %v42
    %v45 = vlog2.pop %v41
    %v46 = vmul.f32 %v45, 0.6931472
    %v47 = vsub.f32 -0.9189385, %v46
    %v48 = vmul.f32 %v44, %v44
    %v49 = vmul.f32 %v48, 0.5
    %v50 = vsub.f32 %v47, %v49
    %v51 = vlaneseq
    %vm52 = vcmp.ge.s32.totalorder %v51, 0
    %vm53 = vcmp.lt.s32.totalorder %v51, 512
    %vm54 = vmand %vm52, %vm53
    %55 = vst.msk [vmem:[#allocation7] sm:$0xf] %vm54, %v50
    // Predicated region
    $region22: #{tpu_custom_call.1} parent=1 // pred_check
      _
    $region23: #{tpu_custom_call.1} parent=1 // pred_check_branch
      %57 = sbr.rel (0) target = $region25
    $region24: #{tpu_custom_call.1} parent=1 // pred_region
      %s59 = ssub.s32 64, 64
      %60 = vsyncadd [#allocation4], %s59
      %s62 = sshll.u32 [#allocation7], 4
      %s63 = int_to_ptr.vmem [resolvable:$true] %s62
      %65 = dma.vmem_to_hbm [thread:$0]  %s63, 64, %s3, [#allocation4]
    $region25: #{tpu_custom_call.1} parent=1 // pred_fallthru
      _
    // Predicated region
    $region26: #{tpu_custom_call.1} parent=1 // pred_check
      _
    $region27: #{tpu_custom_call.1} parent=1 // pred_check_branch
      %67 = sbr.rel (0) target = $region29
    $region28: #{tpu_custom_call.1} parent=1 // pred_region
      %68 = dma.done [#allocation4], 64
    $region29: #{tpu_custom_call.1} parent=1 // pred_fallthru
      _
    %69 = vsyncpa [#allocation3], 1
    %70 = vsyncpa [#allocation6], 1
    %71 = vsyncpa [#allocation4], 1

</llo_original>
